<compile_context>
chip_gen: v7x
topology: tpu7x:2x2x1
jax: 0.10.0
libtpu: 0.0.40
codegen_flags: <defaults>
</compile_context>

<pallas_src>
import functools

import jax
import jax.numpy as jnp
from jax.experimental import pallas as pl
from jax.experimental.pallas import tpu as pltpu


def _round_up(x, m):
    return pl.cdiv(x, m) * m


def mlp_kernel(x_ref, w1_ref, b1_ref, w2_ref, b2_ref, w3t_ref, b3_ref, o_ref,
               *, dim_in, dim_out):
    # x_ref:   (dim_in, bn)      batch on the lane axis
    # w1_ref:  (hidden, dim_in)  b1_ref: (hidden, 1)
    # w2_ref:  (hidden, hidden)  b2_ref: (hidden, 1)
    # w3t_ref: (hidden, dim_out) b3_ref: (dim_out, 1)
    # o_ref:   (dim_out, bn)
    x = x_ref[...]
    w1 = w1_ref[...]

    if dim_in == 1:
        # (hidden,1) * (1,bn) outer product on the VPU -- keep the K=1 layer off the MXU.
        h1 = w1 * x
    else:
        h1 = jnp.dot(w1, x, preferred_element_type=jnp.float32)
    h1 = jnp.maximum(h1 + b1_ref[...], 0.0)                       # (hidden, bn)

    # Dense hidden x hidden layer: the only MXU matmul, batch feeds the MXU N dim.
    h2 = jnp.dot(w2_ref[...], h1, preferred_element_type=jnp.float32)
    h2 = jnp.maximum(h2 + b2_ref[...], 0.0)                       # (hidden, bn)

    w3t = w3t_ref[...]                                            # (hidden, dim_out)
    if dim_out == 1:
        # VPU multiply + sublane reduce instead of an M=1 MXU matmul.
        h3 = jnp.sum(w3t * h2, axis=0, keepdims=True)             # (1, bn)
    else:
        h3 = jax.lax.dot_general(w3t, h2, (((0,), (0,)), ((), ())),
                                 preferred_element_type=jnp.float32)
    o_ref[...] = jnp.tanh(h3 + b3_ref[...]).astype(o_ref.dtype)


@functools.partial(jax.jit, static_argnames=("block_n",))
def maml_mlp_forward_tasks(x, w1, b1, w2, b2, w3, b3, *, block_n=2048):
    """Batched-over-tasks forward (one kernel launch for T MAML tasks).

    x:  (T, N, dim_in)
    w1: (T, hidden, dim_in)   b1: (T, hidden)
    w2: (T, hidden, hidden)   b2: (T, hidden)
    w3: (T, dim_out, hidden)  b3: (T, dim_out)
    returns (T, N, dim_out)
    """
    t_tasks, n, dim_in = x.shape
    hidden = w1.shape[1]
    dim_out = w3.shape[1]
    assert block_n % 128 == 0, "block_n must be a multiple of 128 lanes"

    # --- batch tiling: pad only to 128 lanes, tile big, keep VMEM footprint modest ---
    n_pad = _round_up(n, 128)
    tile_n = min(block_n, n_pad)
    # VMEM guard: double-buffered f32 x/out tiles stay well under v7x's 32 MiB scoped default.
    lane_bytes = 2 * 4 * (dim_in + dim_out)
    max_tile = max(128, ((8 << 20) // lane_bytes) // 128 * 128)
    tile_n = min(tile_n, max_tile)
    # Ensure >=2 parallel grid steps when there is enough work (v7x has two TensorCores).
    if t_tasks * pl.cdiv(n_pad, tile_n) < 2 and n_pad >= 256:
        tile_n = _round_up(pl.cdiv(n_pad, 2), 128)
    grid_n = pl.cdiv(n_pad, tile_n)

    # --- batch-on-lanes relayout; size-1 axes use relayout-free reshapes, no transposes ---
    if dim_in == 1:
        x_t = x.reshape(t_tasks, 1, n)                            # free reshape
    else:
        x_t = jnp.transpose(x, (0, 2, 1))                         # (T, dim_in, N)
    if n_pad != n:
        x_t = jnp.pad(x_t, ((0, 0), (0, 0), (0, n_pad - n)))

    if dim_out == 1:
        w3t = w3.reshape(t_tasks, hidden, 1)                      # free reshape
    else:
        w3t = jnp.transpose(w3, (0, 2, 1))                        # (T, hidden, dim_out)
    b1c = b1.reshape(t_tasks, hidden, 1)
    b2c = b2.reshape(t_tasks, hidden, 1)
    b3c = b3.reshape(t_tasks, dim_out, 1)

    kernel = functools.partial(mlp_kernel, dim_in=dim_in, dim_out=dim_out)

    weight_elems = hidden * dim_in + hidden * hidden + dim_out * hidden + 2 * hidden + dim_out
    cost = pl.CostEstimate(
        flops=2 * t_tasks * n_pad * (dim_in * hidden + hidden * hidden + hidden * dim_out),
        transcendentals=t_tasks * n_pad * dim_out,
        bytes_accessed=4 * (t_tasks * n_pad * (dim_in + dim_out) + t_tasks * weight_elems),
    )

    sq = pl.Squeezed()
    out_t = pl.pallas_call(
        kernel,
        out_shape=jax.ShapeDtypeStruct((t_tasks, dim_out, n_pad), x.dtype),
        grid=(t_tasks, grid_n),
        in_specs=[
            pl.BlockSpec((sq, dim_in, tile_n), lambda t, i: (t, 0, i)),   # x tile (lane-dense)
            pl.BlockSpec((sq, hidden, dim_in), lambda t, i: (t, 0, 0)),   # W1 (resident per task)
            pl.BlockSpec((sq, hidden, 1), lambda t, i: (t, 0, 0)),        # b1
            pl.BlockSpec((sq, hidden, hidden), lambda t, i: (t, 0, 0)),   # W2
            pl.BlockSpec((sq, hidden, 1), lambda t, i: (t, 0, 0)),        # b2
            pl.BlockSpec((sq, hidden, dim_out), lambda t, i: (t, 0, 0)),  # W3^T
            pl.BlockSpec((sq, dim_out, 1), lambda t, i: (t, 0, 0)),       # b3
        ],
        out_specs=pl.BlockSpec((sq, dim_out, tile_n), lambda t, i: (t, 0, i)),
        compiler_params=pltpu.CompilerParams(
            dimension_semantics=("parallel", "parallel")),
        cost_estimate=cost,
    )(x_t, w1, b1c, w2, b2c, w3t, b3c)

    # --- back to (T, N, dim_out); slice only if padded, reshape (not transpose) if dim_out==1 ---
    if n_pad != n:
        out_t = out_t[:, :, :n]
    if dim_out == 1:
        return out_t.reshape(t_tasks, n, 1)                       # free reshape
    return jnp.transpose(out_t, (0, 2, 1))


def maml_mlp_forward(x, w1, b1, w2, b2, w3, b3, *, block_n=2048):
    """Single-task forward. x: (N, dim_in); PyTorch nn.Linear layouts. Returns (N, dim_out)."""
    out = maml_mlp_forward_tasks(x[None], w1[None], b1[None], w2[None], b2[None],
                                 w3[None], b3[None], block_n=block_n)
    return out[0]


def init_params(key, dim_in=1, dim_out=1, hidden=40):
    # PyTorch nn.Linear-style layout/init: W (out, in), b (out,), U(-1/sqrt(fan_in), ...).
    ks = jax.random.split(key, 6)

    def uniform(k, shape, fan_in):
        bound = 1.0 / jnp.sqrt(jnp.float32(fan_in))
        return jax.random.uniform(k, shape, jnp.float32, -bound, bound)

    w1 = uniform(ks[0], (hidden, dim_in), dim_in)
    b1 = uniform(ks[1], (hidden,), dim_in)
    w2 = uniform(ks[2], (hidden, hidden), hidden)
    b2 = uniform(ks[3], (hidden,), hidden)
    w3 = uniform(ks[4], (dim_out, hidden), hidden)
    b3 = uniform(ks[5], (dim_out,), hidden)
    return w1, b1, w2, b2, w3, b3


def reference_forward(x, w1, b1, w2, b2, w3, b3):
    h1 = jnp.maximum(x @ w1.T + b1, 0.0)
    h2 = jnp.maximum(h1 @ w2.T + b2, 0.0)
    return jnp.tanh(h2 @ w3.T + b3)


if __name__ == "__main__":
    key = jax.random.PRNGKey(0)
    dim_in, dim_out, hidden = 1, 1, 40
    k_x, k_p, k_xt, k_pt = jax.random.split(key, 4)

    # --- single task, MAML-sized batch (N=16, no divisibility requirement) ---
    n = 16
    x = jax.random.normal(k_x, (n, dim_in), jnp.float32)
    params = init_params(k_p, dim_in=dim_in, dim_out=dim_out, hidden=hidden)
    out = jax.block_until_ready(maml_mlp_forward(x, *params))
    ref = reference_forward(x, *params)
    assert out.shape == (n, dim_out)
    assert jnp.allclose(out, ref, atol=1e-5, rtol=1e-5), "single-task mismatch vs reference"

    # --- multi-task: one launch over T tasks with per-task weights (leading grid axis) ---
    t_tasks, n2 = 3, 200  # exercises padding (200 -> 256 lanes) and per-task weight indexing
    xs = jax.random.normal(k_xt, (t_tasks, n2, dim_in), jnp.float32)
    pkeys = jax.random.split(k_pt, t_tasks)
    task_params = [jnp.stack(ps) for ps in
                   zip(*(init_params(k, dim_in=dim_in, dim_out=dim_out, hidden=hidden)
                         for k in pkeys))]
    outs = jax.block_until_ready(maml_mlp_forward_tasks(xs, *task_params))
    refs = jax.vmap(reference_forward)(xs, *task_params)
    assert outs.shape == (t_tasks, n2, dim_out)
    assert jnp.allclose(outs, refs, atol=1e-5, rtol=1e-5), "multi-task mismatch vs reference"

    print("KERNEL_OK")
</pallas_src>

<mosaic_0001>
module attributes {stable_mosaic.version = 11 : i64} {
  func.func @mlp_kernel(%arg0: i32, %arg1: i32, %arg2: memref<1x1x128xf32, #tpu.memory_space<vmem>>, %arg3: memref<1x40x1xf32, #tpu.memory_space<vmem>>, %arg4: memref<1x40x1xf32, #tpu.memory_space<vmem>>, %arg5: memref<1x40x40xf32, #tpu.memory_space<vmem>>, %arg6: memref<1x40x1xf32, #tpu.memory_space<vmem>>, %arg7: memref<1x40x1xf32, #tpu.memory_space<vmem>>, %arg8: memref<1x1x1xf32, #tpu.memory_space<vmem>>, %arg9: memref<1x1x128xf32, #tpu.memory_space<vmem>>) attributes {dimension_semantics = [#tpu.dimension_semantics<parallel>, #tpu.dimension_semantics<parallel>], iteration_bounds = array<i64: 1, 1>, scalar_prefetch = 0 : i64, scratch_operands = 0 : i64, tpu.core_type = #tpu.core_type<tc>, window_params = [{transform_indices = @transform_0, window_bounds = array<i64: 1, 1, 128>}, {transform_indices = @transform_1, window_bounds = array<i64: 1, 40, 1>}, {transform_indices = @transform_2, window_bounds = array<i64: 1, 40, 1>}, {transform_indices = @transform_3, window_bounds = array<i64: 1, 40, 40>}, {transform_indices = @transform_4, window_bounds = array<i64: 1, 40, 1>}, {transform_indices = @transform_5, window_bounds = array<i64: 1, 40, 1>}, {transform_indices = @transform_6, window_bounds = array<i64: 1, 1, 1>}, {transform_indices = @transform_7, window_bounds = array<i64: 1, 1, 128>}]} {
    %c0 = arith.constant 0 : index
    %c0_0 = arith.constant 0 : index
    %c0_1 = arith.constant 0 : index
    %0 = vector.load %arg2[%c0, %c0_0, %c0_1] : memref<1x1x128xf32, #tpu.memory_space<vmem>>, vector<1x1x128xf32>
    %1 = vector.shape_cast %0 : vector<1x1x128xf32> to vector<1x128xf32>
    %c0_2 = arith.constant 0 : index
    %c0_3 = arith.constant 0 : index
    %c0_4 = arith.constant 0 : index
    %2 = vector.load %arg3[%c0_2, %c0_3, %c0_4] : memref<1x40x1xf32, #tpu.memory_space<vmem>>, vector<1x40x1xf32>
    %3 = vector.shape_cast %2 : vector<1x40x1xf32> to vector<40x1xf32>
    %4 = vector.broadcast %3 : vector<40x1xf32> to vector<40x128xf32>
    %5 = vector.broadcast %1 : vector<1x128xf32> to vector<40x128xf32>
    %6 = arith.mulf %4, %5 : vector<40x128xf32>
    %c0_5 = arith.constant 0 : index
    %c0_6 = arith.constant 0 : index
    %c0_7 = arith.constant 0 : index
    %7 = vector.load %arg4[%c0_5, %c0_6, %c0_7] : memref<1x40x1xf32, #tpu.memory_space<vmem>>, vector<1x40x1xf32>
    %8 = vector.shape_cast %7 : vector<1x40x1xf32> to vector<40x1xf32>
    %9 = vector.broadcast %8 : vector<40x1xf32> to vector<40x128xf32>
    %10 = arith.addf %6, %9 : vector<40x128xf32>
    %cst = arith.constant 0.000000e+00 : f32
    %11 = vector.broadcast %cst : f32 to vector<40x128xf32>
    %12 = arith.maximumf %10, %11 : vector<40x128xf32>
    %c0_8 = arith.constant 0 : index
    %c0_9 = arith.constant 0 : index
    %c0_10 = arith.constant 0 : index
    %13 = vector.load %arg5[%c0_8, %c0_9, %c0_10] : memref<1x40x40xf32, #tpu.memory_space<vmem>>, vector<1x40x40xf32>
    %14 = vector.shape_cast %13 : vector<1x40x40xf32> to vector<40x40xf32>
    %cst_11 = arith.constant dense<0.000000e+00> : vector<40x128xf32>
    %15 = tpu.matmul %14, %12, %cst_11 {dimension_numbers = #tpu.dot_dimension_numbers<[1], [0], [0], [1], [0, 0, 1, 1], [], []>} : vector<40x40xf32>, vector<40x128xf32>, vector<40x128xf32> -> vector<40x128xf32>
    %c0_12 = arith.constant 0 : index
    %c0_13 = arith.constant 0 : index
    %c0_14 = arith.constant 0 : index
    %16 = vector.load %arg6[%c0_12, %c0_13, %c0_14] : memref<1x40x1xf32, #tpu.memory_space<vmem>>, vector<1x40x1xf32>
    %17 = vector.shape_cast %16 : vector<1x40x1xf32> to vector<40x1xf32>
    %18 = vector.broadcast %17 : vector<40x1xf32> to vector<40x128xf32>
    %19 = arith.addf %15, %18 : vector<40x128xf32>
    %cst_15 = arith.constant 0.000000e+00 : f32
    %20 = vector.broadcast %cst_15 : f32 to vector<40x128xf32>
    %21 = arith.maximumf %19, %20 : vector<40x128xf32>
    %c0_16 = arith.constant 0 : index
    %c0_17 = arith.constant 0 : index
    %c0_18 = arith.constant 0 : index
    %22 = vector.load %arg7[%c0_16, %c0_17, %c0_18] : memref<1x40x1xf32, #tpu.memory_space<vmem>>, vector<1x40x1xf32>
    %23 = vector.shape_cast %22 : vector<1x40x1xf32> to vector<40x1xf32>
    %24 = vector.broadcast %23 : vector<40x1xf32> to vector<40x128xf32>
    %25 = arith.mulf %24, %21 : vector<40x128xf32>
    %cst_19 = arith.constant dense<0.000000e+00> : vector<128xf32>
    %26 = vector.multi_reduction <add>, %25, %cst_19 [0] : vector<40x128xf32> to vector<128xf32>
    %27 = vector.shape_cast %26 : vector<128xf32> to vector<1x128xf32>
    %c0_20 = arith.constant 0 : index
    %c0_21 = arith.constant 0 : index
    %c0_22 = arith.constant 0 : index
    %28 = vector.load %arg8[%c0_20, %c0_21, %c0_22] : memref<1x1x1xf32, #tpu.memory_space<vmem>>, vector<1x1x1xf32>
    %29 = vector.shape_cast %28 : vector<1x1x1xf32> to vector<1x1xf32>
    %30 = vector.broadcast %29 : vector<1x1xf32> to vector<1x128xf32>
    %31 = arith.addf %27, %30 : vector<1x128xf32>
    %32 = math.tanh %31 : vector<1x128xf32>
    %c0_23 = arith.constant 0 : index
    %c0_24 = arith.constant 0 : index
    %c0_25 = arith.constant 0 : index
    %33 = vector.load %arg9[%c0_23, %c0_24, %c0_25] : memref<1x1x128xf32, #tpu.memory_space<vmem>>, vector<1x1x128xf32>
    %34 = vector.shape_cast %33 : vector<1x1x128xf32> to vector<1x128xf32>
    %35 = vector.shape_cast %32 : vector<1x128xf32> to vector<1x1x128xf32>
    tpu.vector_store %arg9[%c0_23, %c0_24, %c0_25], %35 {strides = array<i32>} : memref<1x1x128xf32, #tpu.memory_space<vmem>>, vector<1x1x128xf32>,
    return
  }
  func.func @transform_0(%arg0: i32, %arg1: i32) -> (i32, i32, i32) {
    %c0_i32 = arith.constant 0 : i32
    %c0_i32_0 = arith.constant 0 : i32
    return %arg0, %c0_i32, %arg1 : i32, i32, i32
  }
  func.func @transform_1(%arg0: i32, %arg1: i32) -> (i32, i32, i32) {
    %c0_i32 = arith.constant 0 : i32
    %c0_i32_0 = arith.constant 0 : i32
    %c0_i32_1 = arith.constant 0 : i32
    return %arg0, %c0_i32, %c0_i32_0 : i32, i32, i32
  }
  func.func @transform_2(%arg0: i32, %arg1: i32) -> (i32, i32, i32) {
    %c0_i32 = arith.constant 0 : i32
    %c0_i32_0 = arith.constant 0 : i32
    %c0_i32_1 = arith.constant 0 : i32
    return %arg0, %c0_i32, %c0_i32_0 : i32, i32, i32
  }
  func.func @transform_3(%arg0: i32, %arg1: i32) -> (i32, i32, i32) {
    %c0_i32 = arith.constant 0 : i32
    %c0_i32_0 = arith.constant 0 : i32
    %c0_i32_1 = arith.constant 0 : i32
    return %arg0, %c0_i32, %c0_i32_0 : i32, i32, i32
  }
  func.func @transform_4(%arg0: i32, %arg1: i32) -> (i32, i32, i32) {
    %c0_i32 = arith.constant 0 : i32
    %c0_i32_0 = arith.constant 0 : i32
    %c0_i32_1 = arith.constant 0 : i32
    return %arg0, %c0_i32, %c0_i32_0 : i32, i32, i32
  }
  func.func @transform_5(%arg0: i32, %arg1: i32) -> (i32, i32, i32) {
    %c0_i32 = arith.constant 0 : i32
    %c0_i32_0 = arith.constant 0 : i32
    %c0_i32_1 = arith.constant 0 : i32
    return %arg0, %c0_i32, %c0_i32_0 : i32, i32, i32
  }
  func.func @transform_6(%arg0: i32, %arg1: i32) -> (i32, i32, i32) {
    %c0_i32 = arith.constant 0 : i32
    %c0_i32_0 = arith.constant 0 : i32
    %c0_i32_1 = arith.constant 0 : i32
    return %arg0, %c0_i32, %c0_i32_0 : i32, i32, i32
  }
  func.func @transform_7(%arg0: i32, %arg1: i32) -> (i32, i32, i32) {
    %c0_i32 = arith.constant 0 : i32
    %c0_i32_0 = arith.constant 0 : i32
    return %arg0, %c0_i32, %arg1 : i32, i32, i32
  }
}

</mosaic_0001>

<llo_original>
// kernel: maml_mlp_forward_tasks.1
$region0: #{maml_mlp_forward_tasks.1}
  #allocation0 [shape = 'u32[]', space=smem, size = 0x4, offset = 0x4, fixed_abs, tag = 'smem constant byte address 0x4 - core index']
  #allocation1 [shape = 'u32[144,128]{1,0:T(1,128)}', space=vmem, size = 0x12000, scoped, tag = 'internal scratch']
  #allocation2 [shape = 'f32[1,1,1]{2,1,0:T(1,128)S(1)}', space=vmem, size = 0x200, scoped, tag = 'scoped memory for maml_mlp_forward_tasks.1']
  %s0 = inlined_call_operand.vmem [shape: f32[1,1,128], index: 0, kind: input, shape index: {}]
  %s1 = inlined_call_operand.vmem [shape: f32[1,40,1], index: 1, kind: input, shape index: {}]
  %s2 = inlined_call_operand.vmem [shape: f32[1,40,1], index: 2, kind: input, shape index: {}]
  %s3 = inlined_call_operand.vmem [shape: f32[1,40,40], index: 3, kind: input, shape index: {}]
  %s4 = inlined_call_operand.vmem [shape: f32[1,40,1], index: 4, kind: input, shape index: {}]
  %s5 = inlined_call_operand.vmem [shape: f32[1,40,1], index: 5, kind: input, shape index: {}]
  %s6 = inlined_call_operand.<no memory space> [shape: f32[1,1,1], index: 6, kind: input, shape index: {}]
  %s7 = inlined_call_operand.vmem [shape: f32[1,1,128], index: 7, kind: output, shape index: {}]
  %s8 = sld [smem:[#allocation0]]
  $region38: #{maml_mlp_forward_tasks.1} parent=0
    _
  %s10 = ssub.s32 1, %s8
  %s11 = scalar_select 0, %s10, %s8
  %v12 = vstv %s6
  %13 = vst [vmem:[#allocation2] sm:$0x1] %v12
  // Predicated region
  $region2: #{maml_mlp_forward_tasks.1} parent=0 // pred_check
    _
  $region3: #{maml_mlp_forward_tasks.1} parent=0 // pred_check_branch
    %15 = sbr.rel (0) target = $region5
  $region4: #{maml_mlp_forward_tasks.1} parent=0 // pred_region
    _
  $region5: #{maml_mlp_forward_tasks.1} parent=0 // pred_fallthru
    _
  // Predicated region
  $region6: #{maml_mlp_forward_tasks.1} parent=0 // pred_check
    _
  $region7: #{maml_mlp_forward_tasks.1} parent=0 // pred_check_branch
    %17 = sbr.rel (0) target = $region9
  $region8: #{maml_mlp_forward_tasks.1} parent=0 // pred_region
    _
  $region9: #{maml_mlp_forward_tasks.1} parent=0 // pred_fallthru
    _
  // Predicated region
  $region10: #{maml_mlp_forward_tasks.1} parent=0 // pred_check
    _
  $region11: #{maml_mlp_forward_tasks.1} parent=0 // pred_check_branch
    %19 = sbr.rel (0) target = $region13
  $region12: #{maml_mlp_forward_tasks.1} parent=0 // pred_region
    _
  $region13: #{maml_mlp_forward_tasks.1} parent=0 // pred_fallthru
    _
  // Predicated region
  $region14: #{maml_mlp_forward_tasks.1} parent=0 // pred_check
    _
  $region15: #{maml_mlp_forward_tasks.1} parent=0 // pred_check_branch
    %21 = sbr.rel (0) target = $region17
  $region16: #{maml_mlp_forward_tasks.1} parent=0 // pred_region
    _
  $region17: #{maml_mlp_forward_tasks.1} parent=0 // pred_fallthru
    _
  // Predicated region
  $region18: #{maml_mlp_forward_tasks.1} parent=0 // pred_check
    _
  $region19: #{maml_mlp_forward_tasks.1} parent=0 // pred_check_branch
    %23 = sbr.rel (0) target = $region21
  $region20: #{maml_mlp_forward_tasks.1} parent=0 // pred_region
    _
  $region21: #{maml_mlp_forward_tasks.1} parent=0 // pred_fallthru
    _
  // Predicated region
  $region22: #{maml_mlp_forward_tasks.1} parent=0 // pred_check
    _
  $region23: #{maml_mlp_forward_tasks.1} parent=0 // pred_check_branch
    %25 = sbr.rel (0) target = $region25
  $region24: #{maml_mlp_forward_tasks.1} parent=0 // pred_region
    _
  $region25: #{maml_mlp_forward_tasks.1} parent=0 // pred_fallthru
    _
  // Predicated region
  $region26: #{maml_mlp_forward_tasks.1} parent=0 // pred_check
    _
  $region27: #{maml_mlp_forward_tasks.1} parent=0 // pred_check_branch
    %27 = sbr.rel (0) target = $region29
  $region28: #{maml_mlp_forward_tasks.1} parent=0 // pred_region
    _
  $region29: #{maml_mlp_forward_tasks.1} parent=0 // pred_fallthru
    _
  %v28 = vld [vmem:[%s0] sm:$0x1]
  %v29 = vld [vmem:[%s1] sm:$0xff]
  %v30 = vld [vmem:[%s1 + $0x8] sm:$0xff]
  %v31 = vld [vmem:[%s1 + $0x10] sm:$0xff]
  %v32 = vld [vmem:[%s1 + $0x18] sm:$0xff]
  %v33 = vld [vmem:[%s1 + $0x20] sm:$0xff]
  %35 = vset.pattern.permute.xlu0 0
  %36 = vperm.xlu0 %35, %v29
  %v37 = vpop.permute.xlu0 %36
  %40 = vset.pattern.permute.xlu0 0
  %41 = vperm.xlu0 %40, %v30
  %v42 = vpop.permute.xlu0 %41
  %45 = vset.pattern.permute.xlu0 0
  %46 = vperm.xlu0 %45, %v31
  %v47 = vpop.permute.xlu0 %46
  %50 = vset.pattern.permute.xlu0 0
  %51 = vperm.xlu0 %50, %v32
  %v52 = vpop.permute.xlu0 %51
  %55 = vset.pattern.permute.xlu0 0
  %56 = vperm.xlu0 %55, %v33
  %v57 = vpop.permute.xlu0 %56
  %v60 = vlaneseq
  %v61 = vshrl.u32 %v60, 7
  %v62 = vsub.s32 0, %v61
  %v63 = vrot.slane %v28, %v62
  %v65 = vmul.f32 %v37, %v63
  %v66 = vmul.f32 %v42, %v63
  %v67 = vmul.f32 %v47, %v63
  %v68 = vmul.f32 %v52, %v63
  %v69 = vmul.f32 %v57, %v63
  %v70 = vld [vmem:[%s2] sm:$0xff]
  %v71 = vld [vmem:[%s2 + $0x8] sm:$0xff]
  %v72 = vld [vmem:[%s2 + $0x10] sm:$0xff]
  %v73 = vld [vmem:[%s2 + $0x18] sm:$0xff]
  %v74 = vld [vmem:[%s2 + $0x20] sm:$0xff]
  %76 = vset.pattern.permute.xlu0 0
  %77 = vperm.xlu0 %76, %v70
  %v78 = vpop.permute.xlu0 %77
  %81 = vset.pattern.permute.xlu0 0
  %82 = vperm.xlu0 %81, %v71
  %v83 = vpop.permute.xlu0 %82
  %86 = vset.pattern.permute.xlu0 0
  %87 = vperm.xlu0 %86, %v72
  %v88 = vpop.permute.xlu0 %87
  %91 = vset.pattern.permute.xlu0 0
  %92 = vperm.xlu0 %91, %v73
  %v93 = vpop.permute.xlu0 %92
  %96 = vset.pattern.permute.xlu0 0
  %97 = vperm.xlu0 %96, %v74
  %v98 = vpop.permute.xlu0 %97
  %v100 = vadd.f32 %v65, %v78
  %v101 = vadd.f32 %v66, %v83
  %v102 = vadd.f32 %v67, %v88
  %v103 = vadd.f32 %v68, %v93
  %v104 = vadd.f32 %v69, %v98
  %v105 = vmax.f32 %v100, 0.0
  %v106 = vmax.f32 %v101, 0.0
  %v107 = vmax.f32 %v102, 0.0
  %v108 = vmax.f32 %v103, 0.0
  %v109 = vmax.f32 %v104, 0.0
  %v110 = vld [vmem:[%s3] sm:$0xff]
  %v111 = vld [vmem:[%s3 + $0x8] sm:$0xff]
  %v112 = vld [vmem:[%s3 + $0x10] sm:$0xff]
  %v113 = vld [vmem:[%s3 + $0x18] sm:$0xff]
  %v114 = vld [vmem:[%s3 + $0x20] sm:$0xff]
  %v115 = vld [vmem:[%s4] sm:$0xff]
  %v116 = vld [vmem:[%s4 + $0x8] sm:$0xff]
  %v117 = vld [vmem:[%s4 + $0x10] sm:$0xff]
  %v118 = vld [vmem:[%s4 + $0x18] sm:$0xff]
  %v119 = vld [vmem:[%s4 + $0x20] sm:$0xff]
  %121 = vset.pattern.permute.xlu0 0
  %122 = vperm.xlu0 %121, %v115
  %v123 = vpop.permute.xlu0 %122
  %126 = vset.pattern.permute.xlu0 0
  %127 = vperm.xlu0 %126, %v116
  %v128 = vpop.permute.xlu0 %127
  %131 = vset.pattern.permute.xlu0 0
  %132 = vperm.xlu0 %131, %v117
  %v133 = vpop.permute.xlu0 %132
  %136 = vset.pattern.permute.xlu0 0
  %137 = vperm.xlu0 %136, %v118
  %v138 = vpop.permute.xlu0 %137
  %141 = vset.pattern.permute.xlu0 0
  %142 = vperm.xlu0 %141, %v119
  %v143 = vpop.permute.xlu0 %142
  %vm145 = vcmask 326656
  %v147 = vsel %vm145, %v110, 0
  %v150 = vsel %vm145, %v111, 0
  %v153 = vsel %vm145, %v112, 0
  %v156 = vsel %vm145, %v113, 0
  %v159 = vsel %vm145, %v114, 0
  %161 = vmatprep.subr.mxu0 0.0
  %162 = vmatpush1.msra.mxu0 %v105
  %163 = vmatprep.subr.mxu0 0.0
  %164 = vmatpush1.msra.mxu0 %v106
  %165 = vmatprep.subr.mxu0 0.0
  %166 = vmatpush1.msra.mxu0 %v107
  %167 = vmatprep.subr.mxu0 0.0
  %168 = vmatpush1.msra.mxu0 %v108
  %169 = vmatprep.subr.mxu0 0.0
  %170 = vmatpush1.msra.mxu0 %v109
  %171 = vmatprep.subr.mxu0 0.0
  %172 = vmatpush1.msra.mxu0 0.0
  %173 = vmatprep.subr.mxu0 0.0
  %174 = vmatpush1.msra.mxu0 0.0
  %175 = vmatprep.subr.mxu0 0.0
  %176 = vmatpush1.msra.mxu0 0.0
  %177 = vmatprep.subr.mxu0 0.0
  %178 = vmatpush1.msra.mxu0 0.0
  %179 = vmatprep.subr.mxu0 0.0
  %180 = vmatpush1.msra.mxu0 0.0
  %181 = vmatprep.subr.mxu0 0.0
  %182 = vmatpush1.msra.mxu0 0.0
  %183 = vmatprep.subr.mxu0 0.0
  %184 = vmatpush1.msra.mxu0 0.0
  %185 = vmatprep.subr.mxu0 0.0
  %186 = vmatpush1.msra.mxu0 0.0
  %187 = vmatprep.subr.mxu0 0.0
  %188 = vmatpush1.msra.mxu0 0.0
  %189 = vmatprep.subr.mxu0 0.0
  %190 = vmatpush1.msra.mxu0 0.0
  %191 = vmatprep.subr.mxu0 0.0
  %192 = vmatpush1.msra.mxu0 0.0
  %193 = vmatprep.subr.mxu0 0.0
  %194 = vmatpush1.msra.mxu0 0.0
  %195 = vmatprep.subr.mxu0 0.0
  %196 = vmatpush1.msra.mxu0 0.0
  %197 = vmatprep.subr.mxu0 0.0
  %198 = vmatpush1.msra.mxu0 0.0
  %199 = vmatprep.subr.mxu0 0.0
  %200 = vmatpush1.msra.mxu0 0.0
  %201 = vmatprep.subr.mxu0 0.0
  %202 = vmatpush1.msra.mxu0 0.0
  %203 = vmatprep.subr.mxu0 0.0
  %204 = vmatpush1.msra.mxu0 0.0
  %205 = vmatprep.subr.mxu0 0.0
  %206 = vmatpush1.msra.mxu0 0.0
  %207 = vmatprep.subr.mxu0 0.0
  %208 = vmatpush1.msra.mxu0 0.0
  %209 = vmatprep.subr.mxu0 0.0
  %210 = vmatpush1.msra.mxu0 0.0
  %211 = vmatprep.subr.mxu0 0.0
  %212 = vmatpush1.msra.mxu0 0.0
  %213 = vmatprep.subr.mxu0 0.0
  %214 = vmatpush1.msra.mxu0 0.0
  %215 = vmatprep.subr.mxu0 0.0
  %216 = vmatpush1.msra.mxu0 0.0
  %217 = vmatprep.subr.mxu0 0.0
  %218 = vmatpush1.msra.mxu0 0.0
  %219 = vmatprep.subr.mxu0 0.0
  %220 = vmatpush1.msra.mxu0 0.0
  %221 = vmatprep.subr.mxu0 0.0
  %222 = vmatpush1.msra.mxu0 0.0
  %223 = vmatprep.subr.mxu0 0.0
  %224 = vmatpush1.msra.mxu0 0.0
  %225 = vmatprep.mubr.f32.mxu0 0.0
  %226 = vmatmul.mubr.f32.gmra.mrb[0].mxu0 %v147
  %v227 = vpop.f32.mrb[0].mxu0
  %v228 = vadd.f32 %v123, %v227
  %v229 = vpop.f32.mrb[0].mxu0
  %230 = vmatprep.mubr.f32.mxu0 0.0
  %231 = vmatmul.mubr.f32.gmra.mrb[0].mxu0 %v150
  %v232 = vpop.f32.mrb[0].mxu0
  %v233 = vadd.f32 %v128, %v232
  %v234 = vpop.f32.mrb[0].mxu0
  %235 = vmatprep.mubr.f32.mxu0 0.0
  %236 = vmatmul.mubr.f32.gmra.mrb[0].mxu0 %v153
  %v237 = vpop.f32.mrb[0].mxu0
  %v238 = vadd.f32 %v133, %v237
  %v239 = vpop.f32.mrb[0].mxu0
  %240 = vmatprep.mubr.f32.mxu0 0.0
  %241 = vmatmul.mubr.f32.gmra.mrb[0].mxu0 %v156
  %v242 = vpop.f32.mrb[0].mxu0
  %v243 = vadd.f32 %v138, %v242
  %v244 = vpop.f32.mrb[0].mxu0
  %245 = vmatprep.mubr.f32.mxu0 0.0
  %246 = vmatmul.mubr.f32.gmra.mrb[0].mxu0 %v159
  %v247 = vpop.f32.mrb[0].mxu0
  %v248 = vadd.f32 %v143, %v247
  %v249 = vpop.f32.mrb[0].mxu0
  %250 = vdwg.mxu0
  %v251 = vmax.f32 %v228, 0.0
  %v252 = vmax.f32 %v233, 0.0
  %v253 = vmax.f32 %v238, 0.0
  %v254 = vmax.f32 %v243, 0.0
  %v255 = vmax.f32 %v248, 0.0
  %v256 = vld [vmem:[%s5] sm:$0xff]
  %v257 = vld [vmem:[%s5 + $0x8] sm:$0xff]
  %v258 = vld [vmem:[%s5 + $0x10] sm:$0xff]
  %v259 = vld [vmem:[%s5 + $0x18] sm:$0xff]
  %v260 = vld [vmem:[%s5 + $0x20] sm:$0xff]
  %262 = vset.pattern.permute.xlu0 0
  %263 = vperm.xlu0 %262, %v256
  %v264 = vpop.permute.xlu0 %263
  %267 = vset.pattern.permute.xlu0 0
  %268 = vperm.xlu0 %267, %v257
  %v269 = vpop.permute.xlu0 %268
  %272 = vset.pattern.permute.xlu0 0
  %273 = vperm.xlu0 %272, %v258
  %v274 = vpop.permute.xlu0 %273
  %277 = vset.pattern.permute.xlu0 0
  %278 = vperm.xlu0 %277, %v259
  %v279 = vpop.permute.xlu0 %278
  %282 = vset.pattern.permute.xlu0 0
  %283 = vperm.xlu0 %282, %v260
  %v284 = vpop.permute.xlu0 %283
  %v286 = vmul.f32 %v264, %v251
  %v287 = vmul.f32 %v269, %v252
  %v288 = vmul.f32 %v274, %v253
  %v289 = vmul.f32 %v279, %v254
  %v290 = vmul.f32 %v284, %v255
  %v291 = vadd.f32 %v286, %v287
  %v292 = vadd.f32 %v291, %v288
  %v293 = vadd.f32 %v292, %v289
  %v294 = vadd.f32 %v293, %v290
  %v295 = vrot.slane %v294, 4
  %v296 = vadd.f32 %v294, %v295
  %v297 = vrot.slane %v296, 2
  %v298 = vadd.f32 %v296, %v297
  %v299 = vrot.slane %v298, 1
  %v300 = vadd.f32 %v298, %v299
  %v301 = vld [vmem:[#allocation2] sm:$0x1]
  %303 = vset.pattern.permute.xlu0 0
  %304 = vperm.xlu0 %303, %v301
  %v305 = vpop.permute.xlu0 %304
  %v307 = vlaneseq
  %v308 = vshrl.u32 %v307, 7
  %v309 = vsub.s32 0, %v308
  %v310 = vrot.slane %v305, %v309
  %v311 = vadd.f32 %v300, %v310
  %v312 = vtanh.pop %v311
  %313 = vst [vmem:[%s7] sm:$0x1] %v312
  // Predicated region
  $region30: #{maml_mlp_forward_tasks.1} parent=0 // pred_check
    _
  $region31: #{maml_mlp_forward_tasks.1} parent=0 // pred_check_branch
    %315 = sbr.rel (0) target = $region33
  $region32: #{maml_mlp_forward_tasks.1} parent=0 // pred_region
    _
  $region33: #{maml_mlp_forward_tasks.1} parent=0 // pred_fallthru
    _
  // Predicated region
  $region34: #{maml_mlp_forward_tasks.1} parent=0 // pred_check
    _
  $region35: #{maml_mlp_forward_tasks.1} parent=0 // pred_check_branch
    %317 = sbr.rel (0) target = $region37
  $region36: #{maml_mlp_forward_tasks.1} parent=0 // pred_region
    _
  $region37: #{maml_mlp_forward_tasks.1} parent=0 // pred_fallthru
    _

</llo_original>
